<compile_context>
chip_gen: v6e
topology: v6e:2x2x1
jax: 0.10.0
libtpu: 0.0.40
codegen_flags: <defaults>
</compile_context>

<pallas_src>
import functools

import jax
import jax.numpy as jnp
from jax import lax
from jax.experimental import pallas as pl
from jax.experimental.pallas import tpu as pltpu


C_PAD = 128                      # lane-dense padded classifier width
LAYER_STRIDES = (1, 2, 1, 1)     # static python ints (conv window_strides
                                 # must be hashable under jit)


# ----------------------------------------------------------------------------
# Kernel A: global average pool + bottleneck Linear
#   grid = (B / block_b, Cf / tk_c), ("parallel", "arbitrary")
#   output tile is the resident f32 accumulator across the Cf axis
# ----------------------------------------------------------------------------
def pool_bottleneck_kernel(feat_ref, wb_ref, z_ref, *, inv_hw, hw_chunk):
    k = pl.program_id(1)

    @pl.when(k == 0)
    def _init():
        z_ref[...] = jnp.zeros_like(z_ref)

    bb, HW, ck = feat_ref.shape
    # f32-accumulated average pool over HW, done in small sublane chunks so we
    # never materialize a full f32 copy of the (bb, HW, ck) bf16 block.
    # (bf16 tiles are (16,128): HW pads to a multiple of 16 in VMEM; chunking
    #  by 16 keeps each temp to one sublane tile.)
    pooled = jnp.zeros((bb, ck), jnp.float32)
    start = 0
    while start < HW:                        # static python loop (HW is static)
        size = min(hw_chunk, HW - start)
        pooled = pooled + jnp.sum(
            feat_ref[:, start:start + size, :].astype(jnp.float32), axis=1)
        start += size
    pooled = pooled * inv_hw                 # avgpool + flatten: [bb, ck] f32

    # Embedding.bottleneck Linear partial product for this Cf chunk.
    # wb is kept in f32 (tiny vs feat DMA) for closer parity with the f32
    # PyTorch reference; accumulation is f32 on the MXU.
    # Bias intentionally dropped: it cancels under train-mode BatchNorm (and is
    # zero-initialized in the reference).
    z_ref[...] += jnp.dot(pooled, wb_ref[...],
                          preferred_element_type=jnp.float32)


def choose_block_b(B):
    # Prefer >=2 batch steps (v7x dual-TC sharding + pipelining); block must
    # divide B and be a multiple of 8 (sublane constraint on the output tile).
    for cand in (128, 64, 32, 16, 8):
        if B % cand == 0 and B // cand >= 2:
            return cand
    return B


def choose_tk_c(Cf):
    # Cf reduction tile: divides Cf, multiple of 128, >=2 steps when possible.
    for cand in (512, 256, 128):
        if Cf % cand == 0 and Cf // cand >= 2:
            return cand
    return Cf


def pool_bottleneck(feat, wb):
    B, HW, Cf = feat.shape
    E = wb.shape[1]
    block_b = choose_block_b(B)
    tk_c = choose_tk_c(Cf)
    kern = functools.partial(pool_bottleneck_kernel,
                             inv_hw=1.0 / HW, hw_chunk=16)
    flops = 2 * B * Cf * E + B * HW * Cf
    bytes_accessed = (feat.size * feat.dtype.itemsize
                      + wb.size * wb.dtype.itemsize + B * E * 4)
    return pl.pallas_call(
        kern,
        out_shape=jax.ShapeDtypeStruct((B, E), jnp.float32),
        grid=(B // block_b, Cf // tk_c),          # reduction axis last
        in_specs=[pl.BlockSpec((block_b, HW, tk_c), lambda i, k: (i, 0, k)),
                  pl.BlockSpec((tk_c, E), lambda i, k: (k, 0))],
        out_specs=pl.BlockSpec((block_b, E), lambda i, k: (i, 0)),
        compiler_params=pltpu.CompilerParams(
            dimension_semantics=("parallel", "arbitrary"),
            vmem_limit_bytes=48 * 1024 * 1024),   # fits v7x's 64 MiB physical
        cost_estimate=pl.CostEstimate(flops=flops, transcendentals=0,
                                      bytes_accessed=bytes_accessed),
    )(feat, wb)


# ----------------------------------------------------------------------------
# Kernel B: BatchNorm1d (train) + weight-norm classifier + softmax  (tiny)
# ----------------------------------------------------------------------------
def bn_cls_kernel(z_ref, gb_ref, wc_ref, bc_ref, embed_ref, cls_ref):
    z = z_ref[...]                                           # [B, E] f32
    # BatchNorm1d in training mode: batch stats, biased variance, eps=1e-5.
    mean = jnp.mean(z, axis=0, keepdims=True)
    var = jnp.mean((z - mean) ** 2, axis=0, keepdims=True)
    xhat = (z - mean) * lax.rsqrt(var + 1e-5)
    embed = gb_ref[0:1, :] * xhat + gb_ref[1:2, :]           # gamma*xhat + beta
    embed_ref[...] = embed
    # Weight-normalized classifier. wc is lane-padded to C_PAD with zero
    # columns; the padded bias entries are -1e30 so they vanish under softmax.
    logits = jnp.dot(embed, wc_ref[...],
                     preferred_element_type=jnp.float32) + bc_ref[...]
    m = jnp.max(logits, axis=-1, keepdims=True)
    p = jnp.exp(logits - m)
    cls_ref[...] = p / jnp.sum(p, axis=-1, keepdims=True)    # exact divide


def bn_classifier(z, gb, wc_pad, bc_pad):
    B, E = z.shape
    vmem = pl.BlockSpec(memory_space=pltpu.MemorySpace.VMEM)
    return pl.pallas_call(
        bn_cls_kernel,
        out_shape=(jax.ShapeDtypeStruct((B, E), jnp.float32),
                   jax.ShapeDtypeStruct((B, C_PAD), jnp.float32)),
        in_specs=[vmem] * 4,
        out_specs=(vmem, vmem),
    )(z, gb, wc_pad, bc_pad)


# ----------------------------------------------------------------------------
# Backbone (plain-JAX glue, NHWC): small synthetic stand-in for the pretrained
# torchvision ResNet: conv1(7x7,s2) -> BN -> ReLU -> maxpool(3x3,s2) -> 4 conv
# "layers" -> (avgpool+flatten is fused into Pallas kernel A).
# TODO(synk): the pretrained ResNet-50 bottleneck residual stack has no clean
# synthetic Pallas equivalent; it is abbreviated here to a small conv stack.
# ----------------------------------------------------------------------------
def conv2d(x, w, stride, padding):
    return lax.conv_general_dilated(
        x, w, window_strides=(stride, stride),
        padding=[(padding, padding), (padding, padding)],
        dimension_numbers=('NHWC', 'HWIO', 'NHWC'))


def bn2d_train(x, gamma, beta, eps=1e-5):
    mean = jnp.mean(x, axis=(0, 1, 2), keepdims=True)
    var = jnp.mean((x - mean) ** 2, axis=(0, 1, 2), keepdims=True)
    return gamma * (x - mean) * lax.rsqrt(var + eps) + beta


def maxpool2d(x, k=3, s=2, p=1):
    return lax.reduce_window(x, -jnp.inf, lax.max,
                             (1, k, k, 1), (1, s, s, 1),
                             [(0, 0), (p, p), (p, p), (0, 0)])


def backbone_forward(x_nhwc, params):
    x = conv2d(x_nhwc, params['conv1_w'], stride=2, padding=3)
    x = bn2d_train(x, params['bn1_g'], params['bn1_b'])
    x = jnp.maximum(x, 0.0)
    x = maxpool2d(x)
    for i, stride in enumerate(LAYER_STRIDES):      # strides are static ints
        x = conv2d(x, params[f'layer{i + 1}_w'], stride=stride, padding=1)
        x = bn2d_train(x, params[f'layer{i + 1}_bn_g'],
                       params[f'layer{i + 1}_bn_b'])
        x = jnp.maximum(x, 0.0)
    # bf16 downcast emitted here so it fuses into the last BN/ReLU fusion
    # (Kernel A's dominant DMA is halved without an extra HBM pass).
    return x.astype(jnp.bfloat16)  # [B, H, W, Cf] NHWC bf16


@functools.partial(jax.jit, static_argnames=("class_num",))
def sfunida_forward(input_imgs, params, *, class_num):
    """input_imgs: [B, 3, H, W] (PyTorch NCHW convention).
    Returns (embed_feat, cls_out_softmax) like SFUniDA.forward."""
    x = jnp.transpose(input_imgs, (0, 2, 3, 1))       # one tiny NCHW->NHWC at entry
    featmap = backbone_forward(x, params)             # [B, H, W, Cf] bf16
    B, H, W, Cf = featmap.shape
    feat = featmap.reshape(B, H * W, Cf)              # free reshape
    z = pool_bottleneck(feat, params['wb'])
    embed_feat, cls_pad = bn_classifier(z, params['gb'],
                                        params['wc_pad'], params['bc_pad'])
    return embed_feat, cls_pad[:, :class_num]


# ----------------------------------------------------------------------------
# Deterministic synthetic parameter initialization
# ----------------------------------------------------------------------------
def init_params(key, class_num=8, embed_dim=256):
    ks = jax.random.split(key, 12)
    p = {}

    # backbone stem (HWIO weights for NHWC convs)
    p['conv1_w'] = 0.1 * jax.random.normal(ks[0], (7, 7, 3, 16), jnp.float32)
    p['bn1_g'] = jnp.ones((16,), jnp.float32)
    p['bn1_b'] = jnp.zeros((16,), jnp.float32)

    chans = [(16, 32), (32, 64), (64, 128), (128, 256)]
    for i, (cin, cout) in enumerate(chans):
        p[f'layer{i + 1}_w'] = 0.1 * jax.random.normal(
            ks[1 + i], (3, 3, cin, cout), jnp.float32)
        p[f'layer{i + 1}_bn_g'] = jnp.ones((cout,), jnp.float32)
        p[f'layer{i + 1}_bn_b'] = jnp.zeros((cout,), jnp.float32)

    feat_dim = chans[-1][1]   # 256 (stand-in for ResNet's 2048)

    # Embedding.bottleneck: Linear(feat_dim -> embed_dim), xavier_normal weight.
    # Zero bias dropped (cancels under train-mode BN).
    std_b = (2.0 / (feat_dim + embed_dim)) ** 0.5
    wb = std_b * jax.random.normal(ks[8], (embed_dim, feat_dim), jnp.float32)
    p['wb'] = wb.T.astype(jnp.float32)                # [Cf, E] f32 (tiny vs feat)

    # Embedding.bn affine (gamma, beta) packed into a single [2, E] input
    p['gb'] = jnp.concatenate([jnp.ones((1, embed_dim), jnp.float32),
                               jnp.zeros((1, embed_dim), jnp.float32)], axis=0)

    # Classifier: weight_norm(Linear(embed_dim, class_num)); g is a separate
    # parameter (== ||v|| at init, matching PyTorch weight_norm init).
    std_c = (2.0 / (embed_dim + class_num)) ** 0.5
    v = std_c * jax.random.normal(ks[9], (class_num, embed_dim), jnp.float32)
    row_norm = jnp.sqrt(jnp.sum(v * v, axis=1, keepdims=True))
    g = row_norm                                      # weight_norm init: g = ||v||
    wc_eff = g * v / row_norm                         # [class_num, E]
    bc = jnp.zeros((class_num,), jnp.float32)

    # lane-dense padding to C_PAD: zero weight columns, -1e30 bias on the pads
    wc_pad = jnp.zeros((embed_dim, C_PAD), jnp.float32).at[:, :class_num].set(wc_eff.T)
    bc_pad = jnp.full((1, C_PAD), -1e30, jnp.float32).at[0, :class_num].set(bc)
    p['wc_pad'] = wc_pad
    p['bc_pad'] = bc_pad

    # TODO(synk): SFUniDA.t2i = Linear(512, 1024, bias=False) is unused in
    # forward(); intentionally not materialized. BN running stats are not
    # tracked (train-mode forward only). Dropout in Embedding is unused too.
    return p


if __name__ == "__main__":
    key = jax.random.PRNGKey(0)
    k_img, k_par = jax.random.split(key)

    # B=16 / Cf=256 exercise both grid axes of Kernel A:
    #   batch blocks of 8 (2 "parallel" steps) x Cf tiles of 128 (2 reduction steps)
    B, C_in, H, W = 16, 3, 32, 32
    class_num, embed_dim = 8, 256

    input_imgs = jax.random.normal(k_img, (B, C_in, H, W), jnp.float32)
    params = init_params(k_par, class_num=class_num, embed_dim=embed_dim)

    embed_feat, cls_out = sfunida_forward(input_imgs, params, class_num=class_num)
    jax.block_until_ready((embed_feat, cls_out))

    assert embed_feat.shape == (B, embed_dim)
    assert cls_out.shape == (B, class_num)
    assert bool(jnp.all(jnp.isfinite(embed_feat)))
    assert bool(jnp.all(jnp.isfinite(cls_out)))
    # exact softmax divide -> rows sum to 1 tightly
    assert bool(jnp.allclose(jnp.sum(cls_out, axis=1), 1.0, atol=1e-4))

    print("KERNEL_OK")
</pallas_src>

<mosaic_0001>
module attributes {stable_mosaic.version = 11 : i64} {
  func.func @pool_bottleneck_kernel(%arg0: i32, %arg1: i32, %arg2: memref<8x16x128xbf16, #tpu.memory_space<vmem>>, %arg3: memref<128x256xf32, #tpu.memory_space<vmem>>, %arg4: memref<8x256xf32, #tpu.memory_space<vmem>>) attributes {dimension_semantics = [#tpu.dimension_semantics<parallel>, #tpu.dimension_semantics<arbitrary>], iteration_bounds = array<i64: 2, 2>, scalar_prefetch = 0 : i64, scratch_operands = 0 : i64, tpu.core_type = #tpu.core_type<tc>, window_params = [{transform_indices = @transform_0, window_bounds = array<i64: 8, 16, 128>}, {transform_indices = @transform_1, window_bounds = array<i64: 128, 256>}, {transform_indices = @transform_2, window_bounds = array<i64: 8, 256>}]} {
    %c0_i32 = arith.constant 0 : i32
    %0 = arith.cmpi eq, %arg1, %c0_i32 : i32
    %1 = arith.extui %0 : i1 to i32
    %c0_i32_0 = arith.constant 0 : i32
    %2 = arith.cmpi ne, %1, %c0_i32_0 : i32
    scf.if %2 {
      %cst_12 = arith.constant 0.000000e+00 : f32
      %15 = vector.broadcast %cst_12 : f32 to vector<8x256xf32>
      %c0_13 = arith.constant 0 : index
      %c0_14 = arith.constant 0 : index
      %16 = vector.load %arg4[%c0_13, %c0_14] : memref<8x256xf32, #tpu.memory_space<vmem>>, vector<8x256xf32>
      tpu.vector_store %arg4[%c0_13, %c0_14], %15 {strides = array<i32>} : memref<8x256xf32, #tpu.memory_space<vmem>>, vector<8x256xf32>,
    } else {
    }
    %cst = arith.constant 0.000000e+00 : f32
    %3 = vector.broadcast %cst : f32 to vector<8x128xf32>
    %c0 = arith.constant 0 : index
    %c0_1 = arith.constant 0 : index
    %c0_2 = arith.constant 0 : index
    %4 = vector.load %arg2[%c0, %c0_1, %c0_2] : memref<8x16x128xbf16, #tpu.memory_space<vmem>>, vector<8x16x128xbf16>
    %5 = arith.extf %4 : vector<8x16x128xbf16> to vector<8x16x128xf32>
    %cst_3 = arith.constant dense<0.000000e+00> : vector<8x128xf32>
    %6 = vector.multi_reduction <add>, %5, %cst_3 [1] : vector<8x16x128xf32> to vector<8x128xf32>
    %7 = arith.addf %3, %6 : vector<8x128xf32>
    %cst_4 = arith.constant 6.250000e-02 : f32
    %8 = vector.broadcast %cst_4 : f32 to vector<8x128xf32>
    %9 = arith.mulf %7, %8 : vector<8x128xf32>
    %c0_5 = arith.constant 0 : index
    %c0_6 = arith.constant 0 : index
    %10 = vector.load %arg4[%c0_5, %c0_6] : memref<8x256xf32, #tpu.memory_space<vmem>>, vector<8x256xf32>
    %c0_7 = arith.constant 0 : index
    %c0_8 = arith.constant 0 : index
    %11 = vector.load %arg3[%c0_7, %c0_8] : memref<128x256xf32, #tpu.memory_space<vmem>>, vector<128x256xf32>
    %cst_9 = arith.constant dense<0.000000e+00> : vector<8x256xf32>
    %12 = tpu.matmul %9, %11, %cst_9 {dimension_numbers = #tpu.dot_dimension_numbers<[1], [0], [0], [1], [0, 0, 1, 1], [], []>} : vector<8x128xf32>, vector<128x256xf32>, vector<8x256xf32> -> vector<8x256xf32>
    %13 = arith.addf %10, %12 : vector<8x256xf32>
    %c0_10 = arith.constant 0 : index
    %c0_11 = arith.constant 0 : index
    %14 = vector.load %arg4[%c0_10, %c0_11] : memref<8x256xf32, #tpu.memory_space<vmem>>, vector<8x256xf32>
    tpu.vector_store %arg4[%c0_10, %c0_11], %13 {strides = array<i32>} : memref<8x256xf32, #tpu.memory_space<vmem>>, vector<8x256xf32>,
    return
  }
  func.func @transform_0(%arg0: i32, %arg1: i32) -> (i32, i32, i32) {
    %c0_i32 = arith.constant 0 : i32
    %c0_i32_0 = arith.constant 0 : i32
    return %arg0, %c0_i32, %arg1 : i32, i32, i32
  }
  func.func @transform_1(%arg0: i32, %arg1: i32) -> (i32, i32) {
    %c0_i32 = arith.constant 0 : i32
    %c0_i32_0 = arith.constant 0 : i32
    return %arg1, %c0_i32 : i32, i32
  }
  func.func @transform_2(%arg0: i32, %arg1: i32) -> (i32, i32) {
    %c0_i32 = arith.constant 0 : i32
    %c0_i32_0 = arith.constant 0 : i32
    return %arg0, %c0_i32 : i32, i32
  }
}

module attributes {stable_mosaic.version = 11 : i64} {
  func.func @bn_cls_kernel(%arg0: memref<16x256xf32, #tpu.memory_space<vmem>>, %arg1: memref<2x256xf32, #tpu.memory_space<vmem>>, %arg2: memref<256x128xf32, #tpu.memory_space<vmem>>, %arg3: memref<1x128xf32, #tpu.memory_space<vmem>>, %arg4: memref<16x256xf32, #tpu.memory_space<vmem>>, %arg5: memref<16x128xf32, #tpu.memory_space<vmem>>) attributes {dimension_semantics = [], scalar_prefetch = 0 : i64, scratch_operands = 0 : i64, tpu.core_type = #tpu.core_type<tc>} {
    %c0 = arith.constant 0 : index
    %c0_0 = arith.constant 0 : index
    %0 = vector.load %arg0[%c0, %c0_0] : memref<16x256xf32, #tpu.memory_space<vmem>>, vector<16x256xf32>
    %cst = arith.constant dense<0.000000e+00> : vector<256xf32>
    %1 = vector.multi_reduction <add>, %0, %cst [0] : vector<16x256xf32> to vector<256xf32>
    %2 = vector.shape_cast %1 : vector<256xf32> to vector<1x256xf32>
    %cst_1 = arith.constant 1.600000e+01 : f32
    %3 = vector.broadcast %cst_1 : f32 to vector<1x256xf32>
    %4 = arith.divf %2, %3 : vector<1x256xf32>
    %5 = vector.broadcast %4 : vector<1x256xf32> to vector<16x256xf32>
    %6 = arith.subf %0, %5 : vector<16x256xf32>
    %7 = arith.mulf %6, %6 : vector<16x256xf32>
    %cst_2 = arith.constant dense<0.000000e+00> : vector<256xf32>
    %8 = vector.multi_reduction <add>, %7, %cst_2 [0] : vector<16x256xf32> to vector<256xf32>
    %9 = vector.shape_cast %8 : vector<256xf32> to vector<1x256xf32>
    %cst_3 = arith.constant 1.600000e+01 : f32
    %10 = vector.broadcast %cst_3 : f32 to vector<1x256xf32>
    %11 = arith.divf %9, %10 : vector<1x256xf32>
    %12 = vector.broadcast %4 : vector<1x256xf32> to vector<16x256xf32>
    %13 = arith.subf %0, %12 : vector<16x256xf32>
    %cst_4 = arith.constant 9.99999974E-6 : f32
    %14 = vector.broadcast %cst_4 : f32 to vector<1x256xf32>
    %15 = arith.addf %11, %14 : vector<1x256xf32>
    %16 = math.rsqrt %15 : vector<1x256xf32>
    %17 = vector.broadcast %16 : vector<1x256xf32> to vector<16x256xf32>
    %18 = arith.mulf %13, %17 : vector<16x256xf32>
    %c0_5 = arith.constant 0 : index
    %c0_6 = arith.constant 0 : index
    %19 = vector.load %arg1[%c0_5, %c0_6] : memref<2x256xf32, #tpu.memory_space<vmem>>, vector<1x256xf32>
    %20 = vector.broadcast %19 : vector<1x256xf32> to vector<16x256xf32>
    %21 = arith.mulf %20, %18 : vector<16x256xf32>
    %c1 = arith.constant 1 : index
    %c0_7 = arith.constant 0 : index
    %22 = vector.load %arg1[%c1, %c0_7] : memref<2x256xf32, #tpu.memory_space<vmem>>, vector<1x256xf32>
    %23 = vector.broadcast %22 : vector<1x256xf32> to vector<16x256xf32>
    %24 = arith.addf %21, %23 : vector<16x256xf32>
    %c0_8 = arith.constant 0 : index
    %c0_9 = arith.constant 0 : index
    %25 = vector.load %arg4[%c0_8, %c0_9] : memref<16x256xf32, #tpu.memory_space<vmem>>, vector<16x256xf32>
    tpu.vector_store %arg4[%c0_8, %c0_9], %24 {strides = array<i32>} : memref<16x256xf32, #tpu.memory_space<vmem>>, vector<16x256xf32>,
    %c0_10 = arith.constant 0 : index
    %c0_11 = arith.constant 0 : index
    %26 = vector.load %arg2[%c0_10, %c0_11] : memref<256x128xf32, #tpu.memory_space<vmem>>, vector<256x128xf32>
    %cst_12 = arith.constant dense<0.000000e+00> : vector<16x128xf32>
    %27 = tpu.matmul %24, %26, %cst_12 {dimension_numbers = #tpu.dot_dimension_numbers<[1], [0], [0], [1], [0, 0, 1, 1], [], []>} : vector<16x256xf32>, vector<256x128xf32>, vector<16x128xf32> -> vector<16x128xf32>
    %c0_13 = arith.constant 0 : index
    %c0_14 = arith.constant 0 : index
    %28 = vector.load %arg3[%c0_13, %c0_14] : memref<1x128xf32, #tpu.memory_space<vmem>>, vector<1x128xf32>
    %29 = vector.broadcast %28 : vector<1x128xf32> to vector<16x128xf32>
    %30 = arith.addf %27, %29 : vector<16x128xf32>
    %cst_15 = arith.constant dense<0xFF800000> : vector<16xf32>
    %31 = vector.multi_reduction <maximumf>, %30, %cst_15 [1] : vector<16x128xf32> to vector<16xf32>
    %32 = vector.shape_cast %31 : vector<16xf32> to vector<16x1xf32>
    %33 = vector.broadcast %32 : vector<16x1xf32> to vector<16x128xf32>
    %34 = arith.subf %30, %33 : vector<16x128xf32>
    %35 = math.exp %34 : vector<16x128xf32>
    %cst_16 = arith.constant dense<0.000000e+00> : vector<16xf32>
    %36 = vector.multi_reduction <add>, %35, %cst_16 [1] : vector<16x128xf32> to vector<16xf32>
    %37 = vector.shape_cast %36 : vector<16xf32> to vector<16x1xf32>
    %38 = vector.broadcast %37 : vector<16x1xf32> to vector<16x128xf32>
    %39 = arith.divf %35, %38 : vector<16x128xf32>
    %c0_17 = arith.constant 0 : index
    %c0_18 = arith.constant 0 : index
    %40 = vector.load %arg5[%c0_17, %c0_18] : memref<16x128xf32, #tpu.memory_space<vmem>>, vector<16x128xf32>
    tpu.vector_store %arg5[%c0_17, %c0_18], %39 {strides = array<i32>} : memref<16x128xf32, #tpu.memory_space<vmem>>, vector<16x128xf32>,
    return
  }
}

</mosaic_0001>

<llo_original>
// kernel: sfunida_forward.3
$region0: #{sfunida_forward.3}
  #allocation0 [shape = 'u32[]', space=smem, size = 0x4, offset = 0x4, fixed_abs, tag = 'smem constant byte address 0x4 - core index']
  #allocation1 [shape = 'u32[144,128]{1,0:T(1,128)}', space=vmem, size = 0x12000, scoped, tag = 'internal scratch']
  %s0 = inlined_call_operand.vmem [shape: f32[16,256], index: 0, kind: input, shape index: {}]
  %s1 = inlined_call_operand.vmem [shape: f32[2,256], index: 1, kind: input, shape index: {}]
  %s2 = inlined_call_operand.vmem [shape: f32[256,128], index: 2, kind: input, shape index: {}]
  %s3 = inlined_call_operand.vmem [shape: f32[1,128], index: 3, kind: input, shape index: {}]
  %s4 = inlined_call_operand.hbm [shape: f32[16,256], index: 4, kind: output, shape index: {0}]
  %s5 = inlined_call_operand.vmem [shape: f32[16,128], index: 5, kind: output, shape index: {1}]
  %6 = xla_tuple %s4, %s5
  %s7 = sld [smem:[#allocation0]]
  $region34: #{sfunida_forward.3} parent=0
    _
  %s9 = ssub.s32 1, %s7
  %s10 = scalar_select 0, %s9, %s7
  $region1: #{sfunida_forward.3} parent=0
    #allocation2 [shape = 'u8[16384]{0}', space=vmem, size = 0x4000, scoped, tag = 'output window, operand 0, single buffered']
    #allocation3 [shape = 's32[1]{0}', space=sflag, size = 0x4, scoped, tag = 'scoped memory for sfunida_forward.3']
    %11 = vsyncpa [#allocation3], 0
    // Predicated region
    $region2: #{sfunida_forward.3} parent=1 // pred_check
      _
    $region3: #{sfunida_forward.3} parent=1 // pred_check_branch
      %13 = sbr.rel (0) target = $region5
    $region4: #{sfunida_forward.3} parent=1 // pred_region
      _
    $region5: #{sfunida_forward.3} parent=1 // pred_fallthru
      _
    // Predicated region
    $region6: #{sfunida_forward.3} parent=1 // pred_check
      _
    $region7: #{sfunida_forward.3} parent=1 // pred_check_branch
      %15 = sbr.rel (0) target = $region9
    $region8: #{sfunida_forward.3} parent=1 // pred_region
      _
    $region9: #{sfunida_forward.3} parent=1 // pred_fallthru
      _
    // Predicated region
    $region10: #{sfunida_forward.3} parent=1 // pred_check
      _
    $region11: #{sfunida_forward.3} parent=1 // pred_check_branch
      %17 = sbr.rel (0) target = $region13
    $region12: #{sfunida_forward.3} parent=1 // pred_region
      _
    $region13: #{sfunida_forward.3} parent=1 // pred_fallthru
      _
    // Predicated region
    $region14: #{sfunida_forward.3} parent=1 // pred_check
      _
    $region15: #{sfunida_forward.3} parent=1 // pred_check_branch
      %19 = sbr.rel (0) target = $region17
    $region16: #{sfunida_forward.3} parent=1 // pred_region
      _
    $region17: #{sfunida_forward.3} parent=1 // pred_fallthru
      _
    %v20 = vld [vmem:[%s0] sm:$0xff]
    %v21 = vld [vmem:[%s0 + $0x8] sm:$0xff]
    %v22 = vld [vmem:[%s0 + $0x10] sm:$0xff]
    %v23 = vld [vmem:[%s0 + $0x18] sm:$0xff]
    %v24 = vadd.f32 %v20, %v22
    %v25 = vrot.slane %v24, 4
    %v26 = vadd.f32 %v24, %v25
    %v27 = vrot.slane %v26, 2
    %v28 = vadd.f32 %v26, %v27
    %v29 = vrot.slane %v28, 1
    %v30 = vadd.f32 %v28, %v29
    %v31 = vadd.f32 %v21, %v23
    %v32 = vrot.slane %v31, 4
    %v33 = vadd.f32 %v31, %v32
    %v34 = vrot.slane %v33, 2
    %v35 = vadd.f32 %v33, %v34
    %v36 = vrot.slane %v35, 1
    %v37 = vadd.f32 %v35, %v36
    %v38 = vrcp.pop 16.0
    %v39 = vmul.f32 %v30, %v38
    %v40 = vmul.f32 %v37, %v38
    %v41 = vsub.f32 %v20, %v39
    %v42 = vsub.f32 %v21, %v40
    %v43 = vsub.f32 %v22, %v39
    %v44 = vsub.f32 %v23, %v40
    %v45 = vmul.f32 %v41, %v41
    %v46 = vmul.f32 %v42, %v42
    %v47 = vmul.f32 %v43, %v43
    %v48 = vmul.f32 %v44, %v44
    %v49 = vadd.f32 %v45, %v47
    %v50 = vrot.slane %v49, 4
    %v51 = vadd.f32 %v49, %v50
    %v52 = vrot.slane %v51, 2
    %v53 = vadd.f32 %v51, %v52
    %v54 = vrot.slane %v53, 1
    %v55 = vadd.f32 %v53, %v54
    %v56 = vadd.f32 %v46, %v48
    %v57 = vrot.slane %v56, 4
    %v58 = vadd.f32 %v56, %v57
    %v59 = vrot.slane %v58, 2
    %v60 = vadd.f32 %v58, %v59
    %v61 = vrot.slane %v60, 1
    %v62 = vadd.f32 %v60, %v61
    %v63 = vmul.f32 %v55, %v38
    %v64 = vmul.f32 %v62, %v38
    %v65 = vadd.f32 %v63, 1e-05
    %v66 = vadd.f32 %v64, 1e-05
    %v67 = vrsqrt.pop %v65
    %v68 = vrsqrt.pop %v66
    %v69 = vmul.f32 %v41, %v67
    %v70 = vmul.f32 %v42, %v68
    %v71 = vmul.f32 %v43, %v67
    %v72 = vmul.f32 %v44, %v68
    %v73 = vld [vmem:[%s1] ss:$2 sm:$0x3]
    %v75 = vlaneseq
    %v76 = vshrl.u32 %v75, 7
    %v77 = vsub.s32 0, %v76
    %v78 = vrot.slane %v73, %v77
    %v79 = vlaneseq
    %v80 = vshrl.u32 %v79, 7
    %v81 = vsub.s32 1, %v80
    %v82 = vrot.slane %v73, %v81
    %v85 = vmul.f32 %v78, %v69
    %v86 = vmul.f32 %v82, %v70
    %v87 = vmul.f32 %v78, %v71
    %v88 = vmul.f32 %v82, %v72
    %s89 = scalar_lea.vmem %s1, 1
    %v90 = vld [vmem:[%s89] ss:$2 sm:$0x3]
    %v92 = vlaneseq
    %v93 = vshrl.u32 %v92, 7
    %v94 = vsub.s32 0, %v93
    %v95 = vrot.slane %v90, %v94
    %v96 = vlaneseq
    %v97 = vshrl.u32 %v96, 7
    %v98 = vsub.s32 1, %v97
    %v99 = vrot.slane %v90, %v98
    %v102 = vadd.f32 %v85, %v95
    %v103 = vadd.f32 %v86, %v99
    %v104 = vadd.f32 %v87, %v95
    %v105 = vadd.f32 %v88, %v99
    %106 = vst [vmem:[#allocation2] sm:$0xff] %v102
    %107 = vst [vmem:[#allocation2 + $0x8] sm:$0xff] %v103
    %108 = vst [vmem:[#allocation2 + $0x10] sm:$0xff] %v104
    %109 = vst [vmem:[#allocation2 + $0x18] sm:$0xff] %v105
    %v110 = vld [vmem:[%s2] sm:$0xff]
    %v111 = vld [vmem:[%s2 + $0x8] sm:$0xff]
    %v112 = vld [vmem:[%s2 + $0x10] sm:$0xff]
    %v113 = vld [vmem:[%s2 + $0x18] sm:$0xff]
    %v114 = vld [vmem:[%s2 + $0x20] sm:$0xff]
    %v115 = vld [vmem:[%s2 + $0x28] sm:$0xff]
    %v116 = vld [vmem:[%s2 + $0x30] sm:$0xff]
    %v117 = vld [vmem:[%s2 + $0x38] sm:$0xff]
    %v118 = vld [vmem:[%s2 + $0x40] sm:$0xff]
    %v119 = vld [vmem:[%s2 + $0x48] sm:$0xff]
    %v120 = vld [vmem:[%s2 + $0x50] sm:$0xff]
    %v121 = vld [vmem:[%s2 + $0x58] sm:$0xff]
    %v122 = vld [vmem:[%s2 + $0x60] sm:$0xff]
    %v123 = vld [vmem:[%s2 + $0x68] sm:$0xff]
    %v124 = vld [vmem:[%s2 + $0x70] sm:$0xff]
    %v125 = vld [vmem:[%s2 + $0x78] sm:$0xff]
    %v126 = vld [vmem:[%s2 + $0x80] sm:$0xff]
    %v127 = vld [vmem:[%s2 + $0x88] sm:$0xff]
    %v128 = vld [vmem:[%s2 + $0x90] sm:$0xff]
    %v129 = vld [vmem:[%s2 + $0x98] sm:$0xff]
    %v130 = vld [vmem:[%s2 + $0xa0] sm:$0xff]
    %v131 = vld [vmem:[%s2 + $0xa8] sm:$0xff]
    %v132 = vld [vmem:[%s2 + $0xb0] sm:$0xff]
    %v133 = vld [vmem:[%s2 + $0xb8] sm:$0xff]
    %v134 = vld [vmem:[%s2 + $0xc0] sm:$0xff]
    %v135 = vld [vmem:[%s2 + $0xc8] sm:$0xff]
    %v136 = vld [vmem:[%s2 + $0xd0] sm:$0xff]
    %v137 = vld [vmem:[%s2 + $0xd8] sm:$0xff]
    %v138 = vld [vmem:[%s2 + $0xe0] sm:$0xff]
    %v139 = vld [vmem:[%s2 + $0xe8] sm:$0xff]
    %v140 = vld [vmem:[%s2 + $0xf0] sm:$0xff]
    %v141 = vld [vmem:[%s2 + $0xf8] sm:$0xff]
    %v142 = vld [vmem:[%s3] sm:$0x1]
    %v144 = vlaneseq
    %v145 = vshrl.u32 %v144, 7
    %v146 = vsub.s32 0, %v145
    %v147 = vrot.slane %v142, %v146
    %149 = vmatprep.subr.mxu0 0.0
    %150 = vmatpush1.msra.mxu0 %v125
    %151 = vmatprep.subr.mxu0 0.0
    %152 = vmatpush1.msra.mxu0 %v124
    %153 = vmatprep.subr.mxu0 0.0
    %154 = vmatpush1.msra.mxu0 %v123
    %155 = vmatprep.subr.mxu0 0.0
    %156 = vmatpush1.msra.mxu0 %v122
    %157 = vmatprep.subr.mxu0 0.0
    %158 = vmatpush1.msra.mxu0 %v121
    %159 = vmatprep.subr.mxu0 0.0
    %160 = vmatpush1.msra.mxu0 %v120
    %161 = vmatprep.subr.mxu0 0.0
    %162 = vmatpush1.msra.mxu0 %v119
    %163 = vmatprep.subr.mxu0 0.0
    %164 = vmatpush1.msra.mxu0 %v118
    %165 = vmatprep.subr.mxu0 0.0
    %166 = vmatpush1.msra.mxu0 %v117
    %167 = vmatprep.subr.mxu0 0.0
    %168 = vmatpush1.msra.mxu0 %v116
    %169 = vmatprep.subr.mxu0 0.0
    %170 = vmatpush1.msra.mxu0 %v115
    %171 = vmatprep.subr.mxu0 0.0
    %172 = vmatpush1.msra.mxu0 %v114
    %173 = vmatprep.subr.mxu0 0.0
    %174 = vmatpush1.msra.mxu0 %v113
    %175 = vmatprep.subr.mxu0 0.0
    %176 = vmatpush1.msra.mxu0 %v112
    %177 = vmatprep.subr.mxu0 0.0
    %178 = vmatpush1.msra.mxu0 %v111
    %179 = vmatprep.subr.mxu0 0.0
    %180 = vmatpush1.msra.mxu0 %v110
    %181 = vmatprep.subr.mxu0 0.0
    %182 = vmatpush2.msra.mxu0 %v141
    %183 = vmatprep.subr.mxu0 0.0
    %184 = vmatpush2.msra.mxu0 %v140
    %185 = vmatprep.subr.mxu0 0.0
    %186 = vmatpush2.msra.mxu0 %v139
    %187 = vmatprep.subr.mxu0 0.0
    %188 = vmatpush2.msra.mxu0 %v138
    %189 = vmatprep.subr.mxu0 0.0
    %190 = vmatpush2.msra.mxu0 %v137
    %191 = vmatprep.subr.mxu0 0.0
    %192 = vmatpush2.msra.mxu0 %v136
    %193 = vmatprep.subr.mxu0 0.0
    %194 = vmatpush2.msra.mxu0 %v135
    %195 = vmatprep.subr.mxu0 0.0
    %196 = vmatpush2.msra.mxu0 %v134
    %197 = vmatprep.subr.mxu0 0.0
    %198 = vmatpush2.msra.mxu0 %v133
    %199 = vmatprep.subr.mxu0 0.0
    %200 = vmatpush2.msra.mxu0 %v132
    %201 = vmatprep.subr.mxu0 0.0
    %202 = vmatpush2.msra.mxu0 %v131
    %203 = vmatprep.subr.mxu0 0.0
    %204 = vmatpush2.msra.mxu0 %v130
    %205 = vmatprep.subr.mxu0 0.0
    %206 = vmatpush2.msra.mxu0 %v129
    %207 = vmatprep.subr.mxu0 0.0
    %208 = vmatpush2.msra.mxu0 %v128
    %209 = vmatprep.subr.mxu0 0.0
    %210 = vmatpush2.msra.mxu0 %v127
    %211 = vmatprep.subr.mxu0 0.0
    %212 = vmatpush2.msra.mxu0 %v126
    %213 = vmatprep.mubr.f32.mxu0 %v103
    %214 = vmatmul.mubr.f32.gmra.mxu0 %v102
    %v215 = vpop.f32.mrf.mxu0
    %v216 = vadd.f32 %v147, %v215
    %v217 = vpop.f32.mrf.mxu0
    %218 = vmatprep.mubr.f32.mxu0 %v105
    %219 = vmatmul.mubr.f32.gmra.mxu0 %v104
    %v220 = vpop.f32.mrf.mxu0
    %v221 = vadd.f32 %v147, %v220
    %v222 = vpop.f32.mrf.mxu0
    %223 = vdwg.mxu0
    %224 = vmax.xlane.f32.xlu0 %v216
    %v225 = vpop.xlane.xlu0 %224
    %226 = vmax.xlane.f32.xlu0 %v221
    %v227 = vpop.xlane.xlu0 %226
    %v228 = vsub.f32 %v216, %v225
    %v229 = vsub.f32 %v221, %v227
    %v230 = vmul.f32 %v228, 1.442695
    %v231 = vpow.pop %v230
    %v232 = vmul.f32 %v229, 1.442695
    %v233 = vpow.pop %v232
    %234 = vadd.xlane.f32.xlu0 %v231
    %v235 = vpop.xlane.xlu0 %234
    %236 = vadd.xlane.f32.xlu0 %v233
    %v237 = vpop.xlane.xlu0 %236
    %v238 = vrcp.pop %v235
    %v239 = vmul.f32 %v231, %v238
    %v240 = vrcp.pop %v237
    %v241 = vmul.f32 %v233, %v240
    %242 = vst [vmem:[%s5] sm:$0xff] %v239
    %243 = vst [vmem:[%s5 + $0x8] sm:$0xff] %v241
    // Predicated region
    $region18: #{sfunida_forward.3} parent=1 // pred_check
      _
    $region19: #{sfunida_forward.3} parent=1 // pred_check_branch
      %245 = sbr.rel (0) target = $region21
    $region20: #{sfunida_forward.3} parent=1 // pred_region
      %s247 = ssub.s32 512, 512
      %248 = vsyncadd [#allocation3], %s247
      %s249 = sshll.u32 [#allocation2], 4
      %s250 = int_to_ptr.vmem [resolvable:$true] %s249
      %255 = dma.vmem_to_hbm [thread:$0]  %s250, 512, %s4, [#allocation3], 256, 256, 16
    $region21: #{sfunida_forward.3} parent=1 // pred_fallthru
      _
    // Predicated region
    $region22: #{sfunida_forward.3} parent=1 // pred_check
      _
    $region23: #{sfunida_forward.3} parent=1 // pred_check_branch
      %257 = sbr.rel (0) target = $region25
    $region24: #{sfunida_forward.3} parent=1 // pred_region
      _
    $region25: #{sfunida_forward.3} parent=1 // pred_fallthru
      _
    // Predicated region
    $region26: #{sfunida_forward.3} parent=1 // pred_check
      _
    $region27: #{sfunida_forward.3} parent=1 // pred_check_branch
      %259 = sbr.rel (0) target = $region29
    $region28: #{sfunida_forward.3} parent=1 // pred_region
      %260 = dma.done [#allocation3], 512
    $region29: #{sfunida_forward.3} parent=1 // pred_fallthru
      _
    // Predicated region
    $region30: #{sfunida_forward.3} parent=1 // pred_check
      _
    $region31: #{sfunida_forward.3} parent=1 // pred_check_branch
      %262 = sbr.rel (0) target = $region33
    $region32: #{sfunida_forward.3} parent=1 // pred_region
      _
    $region33: #{sfunida_forward.3} parent=1 // pred_fallthru
      _
    %263 = vsyncpa [#allocation3], 1

// kernel: sfunida_forward.2
$region0: #{sfunida_forward.2}
  #allocation0 [shape = 'u32[]', space=smem, size = 0x4, offset = 0x4, fixed_abs, tag = 'smem constant byte address 0x4 - core index']
  #allocation1 [shape = 'u32[144,128]{1,0:T(1,128)}', space=vmem, size = 0x12000, scoped, tag = 'internal scratch']
  %s0 = inlined_call_operand.vmem [shape: bf16[16,16,256], index: 0, kind: input, shape index: {}]
  %s1 = inlined_call_operand.vmem [shape: f32[256,256], index: 1, kind: input, shape index: {}]
  %s2 = inlined_call_operand.vmem [shape: f32[16,256], index: 2, kind: output, shape index: {}]
  %s3 = sld [smem:[#allocation0]]
  $region86: #{sfunida_forward.2} parent=0
    _
  %s5 = ssub.s32 1, %s3
  %s6 = scalar_select 0, %s5, %s3
  $region1: #{sfunida_forward.2} parent=0
    #allocation2 [shape = 'u8[65536]{0}', space=vmem, size = 0x10000, scoped, tag = 'input window, operand 0']
    loop: start=0, step=1, limit=6
    $region2: #{sfunida_forward.2} parent=1 // loop_pre_header
      _
    $region3: #{sfunida_forward.2} parent=1 // loop_header
      %s8 = sphi 0, %s12
      %p9 = scmp.ge.s32.totalorder %s8, 6
      %s15 = sphi 0, %s27
      %s16 = sphi 0, %s23
      %s17 = sphi 0, %s15
      %s18 = sphi 0, %s16
      %s19 = sphi 0, %s17
      %s20 = sphi 0, %s18
      %s32 = sphi 0, %s34
      %s35 = sphi 0, %s32
      %s36 = sphi 0, %s35
      %s52 = sphi 0, %s36
      %s58 = sphi 0, %s60
      %s61 = sphi 0, %s58
      %s62 = sphi 0, %s61
      %s78 = sphi 0, %s62
      %s84 = sphi 0, %s86
      %s87 = sphi 0, %s84
      %s88 = sphi 0, %s87
      %s104 = sphi 0, %s88
    $region4: #{sfunida_forward.2} parent=1 // loop_header_branch
      %11 = sbr.rel (%p9) target = $region8
    $region5: #{sfunida_forward.2} parent=1 // loop_body
      %s13 = ssub.s32 %s8, 1
      %s14 = ssub.s32 %s8, 2
      %s21 = sadd.s32 1, %s16
      %p22 = scmp.ge.s32.totalorder %s21, 2
      %s23 = scalar_select %p22, 0, %s21
      %s24 = sadd.s32 1, %s15
      %s25 = scalar_select %p22, %s24, %s15
      %p26 = scmp.ge.s32.totalorder %s25, 2
      %s27 = scalar_select %p26, 0, %s25
      %s28 = ssub.s32 %s15, %s27
      %s29 = ssub.s32 %s16, %s23
      %s30 = sor.u32 %s28, %s29
      %p31 = scmp.eq.s32.totalorder %s30, 0
      %s33 = sadd.s32 %s32, 1
      %s34 = scalar_select %p31, %s32, %s33
      %p37 = pneg %p31
      %p38 = scmp.eq.s32.totalorder %s8, 3
      %p39 = por %p37, %p38
      %p40 = scmp.ne.s32.totalorder %s32, %s35
      %p41 = scmp.eq.s32.totalorder %s8, 0
      %p42 = por %p40, %p41
      %p43 = scmp.ne.s32.totalorder %s32, %s35
      %p44 = scmp.eq.s32.totalorder %s13, 3
      %p45 = por %p43, %p44
      %p46 = scmp.ne.s32.totalorder %s35, %s36
      %p47 = scmp.eq.s32.totalorder %s13, 0
      %p48 = por %p46, %p47
      %p49 = scmp.ne.s32.totalorder %s35, %s36
      %p50 = scmp.eq.s32.totalorder %s14, 3
      %p51 = por %p49, %p50
      %p53 = scmp.ne.s32.totalorder %s36, %s52
      %p54 = scmp.eq.s32.totalorder %s14, 0
      %p55 = por %p53, %p54
      %s56 = ssub.s32 %s16, %s23
      %p57 = scmp.eq.s32.totalorder %s56, 0
      %s59 = sadd.s32 %s58, 1
      %s60 = scalar_select %p57, %s58, %s59
      %p63 = pneg %p57
      %p64 = scmp.eq.s32.totalorder %s8, 3
      %p65 = por %p63, %p64
      %p66 = scmp.ne.s32.totalorder %s58, %s61
      %p67 = scmp.eq.s32.totalorder %s8, 0
      %p68 = por %p66, %p67
      %p69 = scmp.ne.s32.totalorder %s58, %s61
      %p70 = scmp.eq.s32.totalorder %s13, 3
      %p71 = por %p69, %p70
      %p72 = scmp.ne.s32.totalorder %s61, %s62
      %p73 = scmp.eq.s32.totalorder %s13, 0
      %p74 = por %p72, %p73
      %p75 = scmp.ne.s32.totalorder %s61, %s62
      %p76 = scmp.eq.s32.totalorder %s14, 3
      %p77 = por %p75, %p76
      %p79 = scmp.ne.s32.totalorder %s62, %s78
      %p80 = scmp.eq.s32.totalorder %s14, 0
      %p81 = por %p79, %p80
      %s82 = ssub.s32 %s15, %s27
      %p83 = scmp.eq.s32.totalorder %s82, 0
      %s85 = sadd.s32 %s84, 1
      %s86 = scalar_select %p83, %s84, %s85
      %p89 = pneg %p83
      %p90 = scmp.eq.s32.totalorder %s8, 3
      %p91 = por %p89, %p90
      %p92 = scmp.ne.s32.totalorder %s84, %s87
      %p93 = scmp.eq.s32.totalorder %s8, 0
      %p94 = por %p92, %p93
      %p95 = scmp.ne.s32.totalorder %s84, %s87
      %p96 = scmp.eq.s32.totalorder %s13, 3
      %p97 = por %p95, %p96
      %p98 = scmp.ne.s32.totalorder %s87, %s88
      %p99 = scmp.eq.s32.totalorder %s13, 0
      %p100 = por %p98, %p99
      %p101 = scmp.ne.s32.totalorder %s87, %s88
      %p102 = scmp.eq.s32.totalorder %s14, 3
      %p103 = por %p101, %p102
      %p105 = scmp.ne.s32.totalorder %s88, %s104
      %p106 = scmp.eq.s32.totalorder %s14, 0
      %p107 = por %p105, %p106
      %p108 = scmp.le.s32.totalorder 1, %s8
      %p109 = scmp.lt.s32.totalorder %s8, 5
      %p110 = pnand %p108, %p109
      %p111 = pneg %p110
      // Predicated region
      $region9: #{sfunida_forward.2} parent=5 // pred_check
        _
      $region10: #{sfunida_forward.2} parent=5 // pred_check_branch
        %113 = sbr.rel (%p110) target = $region12
      $region11: #{sfunida_forward.2} parent=5 // pred_region
        %s114 = ssub.s32 %s8, 1
      $region12: #{sfunida_forward.2} parent=5 // pred_fallthru
        _
      %p115 = scmp.lt.s32.totalorder %s8, 4
      // Predicated region
      $region13: #{sfunida_forward.2} parent=5 // pred_check
        %p116 = pneg %p115
      $region14: #{sfunida_forward.2} parent=5 // pred_check_branch
        %118 = sbr.rel (%p116) target = $region16
      $region15: #{sfunida_forward.2} parent=5 // pred_region
        // Predicated region
        $region17: #{sfunida_forward.2} parent=15 // pred_check
          %p119 = pneg %p42
        $region18: #{sfunida_forward.2} parent=15 // pred_check_branch
          %121 = sbr.rel (%p119) target = $region20
        $region19: #{sfunida_forward.2} parent=15 // pred_region
          %s122 = sand.u32 %s32, 1
          %s123 = sand.u32 %s32, 1
          %s124 = smul.addr %s123, 64
          %s125 = scalar_lea.vmem [#allocation2], %s124
          %s126 = smul.u32 8, %s15
          %s127 = smul.addr %s126, 4
          %s128 = sadd.s32 %s16, %s127
          %s129 = smul.addr %s128, 4
          %s130 = scalar_lea.vmem %s0, %s129
          // Predicated region
          $region21: #{sfunida_forward.2} parent=19 // pred_check
            _
          $region22: #{sfunida_forward.2} parent=19 // pred_check_branch
            %132 = sbr.rel (0) target = $region24
          $region23: #{sfunida_forward.2} parent=19 // pred_region
            // Predicated region
            $region25: #{sfunida_forward.2} parent=23 // pred_check
              _
            $region26: #{sfunida_forward.2} parent=23 // pred_check_branch
              %134 = sbr.rel target = $region28
            $region27: #{sfunida_forward.2} parent=23 // pred_region
              // Predicated region
              $region40: #{sfunida_forward.2} parent=27 // pred_check
                _
              $region41: #{sfunida_forward.2} parent=27 // pred_check_branch
                %180 = sbr.rel (0) target = $region43
              $region42: #{sfunida_forward.2} parent=27 // pred_region
                loop: start=0, step=1, limit=1
                $region44: #{sfunida_forward.2} parent=42 // loop_pre_header
                  _
                $region45: #{sfunida_forward.2} parent=42 // loop_header
                  %s182 = sphi 0, %s186
                  %p183 = scmp.ge.s32.totalorder %s182, 1
                  %s187 = sphi %s130, %s130
                  %s188 = sphi %s125, %s125
                $region46: #{sfunida_forward.2} parent=42 // loop_header_branch
                  %185 = sbr.rel (%p183) target = $region50
                $region47: #{sfunida_forward.2} parent=42 // loop_body
                  _
                $region48: #{sfunida_forward.2} parent=42 // loop_footer
                  %s186 = sadd.s32 1, %s182
                $region49: #{sfunida_forward.2} parent=42 // loop_footer_branch
                  %181 = sbr.rel target = $region45
                $region50: #{sfunida_forward.2} parent=42 // loop_exit
                  _
                %s190 = ssub.s32 16, 1
                loop: start=0, step=1, limit=1
                $region51: #{sfunida_forward.2} parent=42 // loop_pre_header
                  _
                $region52: #{sfunida_forward.2} parent=42 // loop_header
                  %s192 = sphi 0, %s196
                  %p193 = scmp.ge.s32.totalorder %s192, 1
                  %s197 = sphi %s130, %s130
                  %s198 = sphi %s125, %s125
                $region53: #{sfunida_forward.2} parent=42 // loop_header_branch
                  %195 = sbr.rel (%p193) target = $region57
                $region54: #{sfunida_forward.2} parent=42 // loop_body
                  %v199 = vld [vmem:[%s197] sm:%s190]
                  %200 = vst [vmem:[%s198] sm:%s190] %v199
                  %v201 = vld [vmem:[%s197 + $0x8] sm:%s190]
                  %202 = vst [vmem:[%s198 + $0x4] sm:%s190] %v201
                  %v203 = vld [vmem:[%s197 + $0x10] sm:%s190]
                  %204 = vst [vmem:[%s198 + $0x8] sm:%s190] %v203
                  %v205 = vld [vmem:[%s197 + $0x18] sm:%s190]
                  %206 = vst [vmem:[%s198 + $0xc] sm:%s190] %v205
                  %v207 = vld [vmem:[%s197 + $0x20] sm:%s190]
                  %208 = vst [vmem:[%s198 + $0x10] sm:%s190] %v207
                  %v209 = vld [vmem:[%s197 + $0x28] sm:%s190]
                  %210 = vst [vmem:[%s198 + $0x14] sm:%s190] %v209
                  %v211 = vld [vmem:[%s197 + $0x30] sm:%s190]
                  %212 = vst [vmem:[%s198 + $0x18] sm:%s190] %v211
                  %v213 = vld [vmem:[%s197 + $0x38] sm:%s190]
                  %214 = vst [vmem:[%s198 + $0x1c] sm:%s190] %v213
                  %v215 = vld [vmem:[%s197 + $0x40] sm:%s190]
                  %216 = vst [vmem:[%s198 + $0x20] sm:%s190] %v215
                  %v217 = vld [vmem:[%s197 + $0x48] sm:%s190]
                  %218 = vst [vmem:[%s198 + $0x24] sm:%s190] %v217
                  %v219 = vld [vmem:[%s197 + $0x50] sm:%s190]
                  %220 = vst [vmem:[%s198 + $0x28] sm:%s190] %v219
                  %v221 = vld [vmem:[%s197 + $0x58] sm:%s190]
                  %222 = vst [vmem:[%s198 + $0x2c] sm:%s190] %v221
                  %v223 = vld [vmem:[%s197 + $0x60] sm:%s190]
                  %224 = vst [vmem:[%s198 + $0x30] sm:%s190] %v223
                  %v225 = vld [vmem:[%s197 + $0x68] sm:%s190]
                  %226 = vst [vmem:[%s198 + $0x34] sm:%s190] %v225
                  %v227 = vld [vmem:[%s197 + $0x70] sm:%s190]
                  %228 = vst [vmem:[%s198 + $0x38] sm:%s190] %v227
                  %v229 = vld [vmem:[%s197 + $0x78] sm:%s190]
                  %230 = vst [vmem:[%s198 + $0x3c] sm:%s190] %v229
                $region55: #{sfunida_forward.2} parent=42 // loop_footer
                  %s196 = sadd.s32 1, %s192
                $region56: #{sfunida_forward.2} parent=42 // loop_footer_branch
                  %191 = sbr.rel target = $region52
                $region57: #{sfunida_forward.2} parent=42 // loop_exit
                  _
              $region43: #{sfunida_forward.2} parent=27 // pred_fallthru
                _
            $region28: #{sfunida_forward.2} parent=23 // pred_fallthru
              _
            // Predicated region
            $region29: #{sfunida_forward.2} parent=23 // pred_check
              _
            $region30: #{sfunida_forward.2} parent=23 // pred_check_branch
              %136 = sbr.rel (0) target = $region32
            $region31: #{sfunida_forward.2} parent=23 // pred_region
              %s138 = ssub.s32 16, 1
              loop: start=0, step=1, limit=1
              $region33: #{sfunida_forward.2} parent=31 // loop_pre_header
                _
              $region34: #{sfunida_forward.2} parent=31 // loop_header
                %s140 = sphi 0, %s144
                %p141 = scmp.ge.s32.totalorder %s140, 1
                %s145 = sphi %s130, %s130
                %s146 = sphi %s125, %s125
              $region35: #{sfunida_forward.2} parent=31 // loop_header_branch
                %143 = sbr.rel (%p141) target = $region39
              $region36: #{sfunida_forward.2} parent=31 // loop_body
                %v147 = vld [vmem:[%s145] sm:%s138]
                %148 = vst [vmem:[%s146] sm:%s138] %v147
                %v149 = vld [vmem:[%s145 + $0x8] sm:%s138]
                %150 = vst [vmem:[%s146 + $0x4] sm:%s138] %v149
                %v151 = vld [vmem:[%s145 + $0x10] sm:%s138]
                %152 = vst [vmem:[%s146 + $0x8] sm:%s138] %v151
                %v153 = vld [vmem:[%s145 + $0x18] sm:%s138]
                %154 = vst [vmem:[%s146 + $0xc] sm:%s138] %v153
                %v155 = vld [vmem:[%s145 + $0x20] sm:%s138]
                %156 = vst [vmem:[%s146 + $0x10] sm:%s138] %v155
                %v157 = vld [vmem:[%s145 + $0x28] sm:%s138]
                %158 = vst [vmem:[%s146 + $0x14] sm:%s138] %v157
                %v159 = vld [vmem:[%s145 + $0x30] sm:%s138]
                %160 = vst [vmem:[%s146 + $0x18] sm:%s138] %v159
                %v161 = vld [vmem:[%s145 + $0x38] sm:%s138]
                %162 = vst [vmem:[%s146 + $0x1c] sm:%s138] %v161
                %v163 = vld [vmem:[%s145 + $0x40] sm:%s138]
                %164 = vst [vmem:[%s146 + $0x20] sm:%s138] %v163
                %v165 = vld [vmem:[%s145 + $0x48] sm:%s138]
                %166 = vst [vmem:[%s146 + $0x24] sm:%s138] %v165
                %v167 = vld [vmem:[%s145 + $0x50] sm:%s138]
                %168 = vst [vmem:[%s146 + $0x28] sm:%s138] %v167
                %v169 = vld [vmem:[%s145 + $0x58] sm:%s138]
                %170 = vst [vmem:[%s146 + $0x2c] sm:%s138] %v169
                %v171 = vld [vmem:[%s145 + $0x60] sm:%s138]
                %172 = vst [vmem:[%s146 + $0x30] sm:%s138] %v171
                %v173 = vld [vmem:[%s145 + $0x68] sm:%s138]
                %174 = vst [vmem:[%s146 + $0x34] sm:%s138] %v173
                %v175 = vld [vmem:[%s145 + $0x70] sm:%s138]
                %176 = vst [vmem:[%s146 + $0x38] sm:%s138] %v175
                %v177 = vld [vmem:[%s145 + $0x78] sm:%s138]
                %178 = vst [vmem:[%s146 + $0x3c] sm:%s138] %v177
              $region37: #{sfunida_forward.2} parent=31 // loop_footer
                %s144 = sadd.s32 1, %s140
              $region38: #{sfunida_forward.2} parent=31 // loop_footer_branch
                %139 = sbr.rel target = $region34
              $region39: #{sfunida_forward.2} parent=31 // loop_exit
                _
            $region32: #{sfunida_forward.2} parent=23 // pred_fallthru
              _
          $region24: #{sfunida_forward.2} parent=19 // pred_fallthru
            _
          %231 = vnop
        $region20: #{sfunida_forward.2} parent=15 // pred_fallthru
          _
        // Predicated region
        $region58: #{sfunida_forward.2} parent=15 // pred_check
          %p232 = pneg %p68
        $region59: #{sfunida_forward.2} parent=15 // pred_check_branch
          %234 = sbr.rel (%p232) target = $region61
        $region60: #{sfunida_forward.2} parent=15 // pred_region
          %s235 = smul.u32 16, %s16
          %p236 = scmp.lt.s32.totalorder %s235, 31
          %s237 = scalar_select %p236, %s235, 31
          %s238 = smul.addr %s237, 2
          %s239 = smul.addr %s238, 8
          %s240 = scalar_lea.vmem %s1, %s239
          %s241 = smul.u32 16, %s16
        $region61: #{sfunida_forward.2} parent=15 // pred_fallthru
          _
      $region16: #{sfunida_forward.2} parent=5 // pred_fallthru
        _
      %p242 = scmp.le.s32.totalorder 1, %s8
      %p243 = scmp.lt.s32.totalorder %s8, 5
      %p244 = pnand %p242, %p243
      %p245 = pneg %p244
      // Predicated region
      $region62: #{sfunida_forward.2} parent=5 // pred_check
        _
      $region63: #{sfunida_forward.2} parent=5 // pred_check_branch
        %247 = sbr.rel (%p244) target = $region65
      $region64: #{sfunida_forward.2} parent=5 // pred_region
        %s248 = ssub.s32 %s8, 1
        %s249 = sand.u32 %s35, 1
        %s250 = sand.u32 %s35, 1
        %s251 = smul.addr %s250, 64
        %s252 = scalar_lea.vmem [#allocation2], %s251
        // Predicated region
        $region66: #{sfunida_forward.2} parent=64 // pred_check
          %p253 = pneg %p48
        $region67: #{sfunida_forward.2} parent=64 // pred_check_branch
          %255 = sbr.rel (%p253) target = $region69
        $region68: #{sfunida_forward.2} parent=64 // pred_region
          _
        $region69: #{sfunida_forward.2} parent=64 // pred_fallthru
          _
        %s256 = sand.u32 %s35, 1
        %s257 = sand.u32 %s35, 1
        %s258 = smul.addr %s257, 64
        %s259 = scalar_lea.vmem [#allocation2], %s258
        %p260 = pneg %p48
        %p261 = pneg %p45
        %s262 = smul.u32 16, %s18
        %p263 = scmp.lt.s32.totalorder %s262, 31
        %s264 = scalar_select %p263, %s262, 31
        %s265 = smul.addr %s264, 2
        %s266 = smul.addr %s265, 8
        %s267 = scalar_lea.vmem %s1, %s266
        %p268 = pneg %p74
        %p269 = pneg %p71
        %p270 = pneg %p100
        %p271 = pneg %p97
        %p272 = scmp.lt.s32.totalorder %s17, 1
        %s273 = scalar_select %p272, %s17, 1
        %s274 = smul.addr %s273, 2
        %s275 = smul.addr %s274, 8
        %s276 = scalar_lea.vmem %s2, %s275
        %s277 = smul.u32 8, %s17
        %s278 = smul.u32 16, %s18
        %p279 = scmp.lt.s32.totalorder %s278, 31
        %s280 = scalar_select %p279, %s278, 31
        %s281 = smul.addr %s280, 2
        %s282 = smul.addr %s281, 8
        %s283 = scalar_lea.vmem %s1, %s282
        %s284 = smul.u32 16, %s18
        %p285 = scmp.lt.s32.totalorder %s17, 1
        %s286 = scalar_select %p285, %s17, 1
        %s287 = smul.addr %s286, 2
        %s288 = smul.addr %s287, 8
        %s289 = scalar_lea.vmem %s2, %s288
        %p290 = scmp.eq.s32.totalorder %s18, 0
        // Predicated region
        $region70: #{sfunida_forward.2} parent=64 // pred_check
          %p291 = pneg %p290
        $region71: #{sfunida_forward.2} parent=64 // pred_check_branch
          %293 = sbr.rel (%p291) target = $region73
        $region72: #{sfunida_forward.2} parent=64 // pred_region
          %294 = vst [vmem:[%s289] sm:$0xff] 0.0
          %295 = vst [vmem:[%s289 + $0x8] sm:$0xff] 0.0
        $region73: #{sfunida_forward.2} parent=64 // pred_fallthru
          _
        %v296 = vld [vmem:[%s252] sm:$0xf]
        %v297 = vld [vmem:[%s252 + $0x4] sm:$0xf]
        %v298 = vld [vmem:[%s252 + $0x8] sm:$0xf]
        %v299 = vld [vmem:[%s252 + $0xc] sm:$0xf]
        %v300 = vld [vmem:[%s252 + $0x10] sm:$0xf]
        %v301 = vld [vmem:[%s252 + $0x14] sm:$0xf]
        %v302 = vld [vmem:[%s252 + $0x18] sm:$0xf]
        %v303 = vld [vmem:[%s252 + $0x1c] sm:$0xf]
        %v304 = vld [vmem:[%s252 + $0x20] sm:$0xf]
        %v305 = vld [vmem:[%s252 + $0x24] sm:$0xf]
        %v306 = vld [vmem:[%s252 + $0x28] sm:$0xf]
        %v307 = vld [vmem:[%s252 + $0x2c] sm:$0xf]
        %v308 = vld [vmem:[%s252 + $0x30] sm:$0xf]
        %v309 = vld [vmem:[%s252 + $0x34] sm:$0xf]
        %v310 = vld [vmem:[%s252 + $0x38] sm:$0xf]
        %v311 = vld [vmem:[%s252 + $0x3c] sm:$0xf]
        %v312 = vunpack.c.l.bf16 %v296
        %v313 = vunpack.c.l.bf16 %v297
        %v314 = vunpack.c.l.bf16 %v298
        %v315 = vunpack.c.l.bf16 %v299
        %v316 = vunpack.c.l.bf16 %v300
        %v317 = vunpack.c.l.bf16 %v301
        %v318 = vunpack.c.l.bf16 %v302
        %v319 = vunpack.c.l.bf16 %v303
        %v320 = vunpack.c.l.bf16 %v304
        %v321 = vunpack.c.l.bf16 %v305
        %v322 = vunpack.c.l.bf16 %v306
        %v323 = vunpack.c.l.bf16 %v307
        %v324 = vunpack.c.l.bf16 %v308
        %v325 = vunpack.c.l.bf16 %v309
        %v326 = vunpack.c.l.bf16 %v310
        %v327 = vunpack.c.l.bf16 %v311
        %v328 = vadd.f32 %v312, %v313
        %v329 = vrot.slane %v328, 4
        %v330 = vadd.f32 %v328, %v329
        %v331 = vrot.slane %v330, 2
        %v332 = vadd.f32 %v330, %v331
        %v333 = vrot.slane %v332, 1
        %v334 = vadd.f32 %v332, %v333
        %v335 = vadd.f32 %v314, %v315
        %v336 = vrot.slane %v335, 4
        %v337 = vadd.f32 %v335, %v336
        %v338 = vrot.slane %v337, 2
        %v339 = vadd.f32 %v337, %v338
        %v340 = vrot.slane %v339, 1
        %v341 = vadd.f32 %v339, %v340
        %v342 = vadd.f32 %v316, %v317
        %v343 = vrot.slane %v342, 4
        %v344 = vadd.f32 %v342, %v343
        %v345 = vrot.slane %v344, 2
        %v346 = vadd.f32 %v344, %v345
        %v347 = vrot.slane %v346, 1
        %v348 = vadd.f32 %v346, %v347
        %v349 = vadd.f32 %v318, %v319
        %v350 = vrot.slane %v349, 4
        %v351 = vadd.f32 %v349, %v350
        %v352 = vrot.slane %v351, 2
        %v353 = vadd.f32 %v351, %v352
        %v354 = vrot.slane %v353, 1
        %v355 = vadd.f32 %v353, %v354
        %v356 = vadd.f32 %v320, %v321
        %v357 = vrot.slane %v356, 4
        %v358 = vadd.f32 %v356, %v357
        %v359 = vrot.slane %v358, 2
        %v360 = vadd.f32 %v358, %v359
        %v361 = vrot.slane %v360, 1
        %v362 = vadd.f32 %v360, %v361
        %v363 = vadd.f32 %v322, %v323
        %v364 = vrot.slane %v363, 4
        %v365 = vadd.f32 %v363, %v364
        %v366 = vrot.slane %v365, 2
        %v367 = vadd.f32 %v365, %v366
        %v368 = vrot.slane %v367, 1
        %v369 = vadd.f32 %v367, %v368
        %v370 = vadd.f32 %v324, %v325
        %v371 = vrot.slane %v370, 4
        %v372 = vadd.f32 %v370, %v371
        %v373 = vrot.slane %v372, 2
        %v374 = vadd.f32 %v372, %v373
        %v375 = vrot.slane %v374, 1
        %v376 = vadd.f32 %v374, %v375
        %v377 = vadd.f32 %v326, %v327
        %v378 = vrot.slane %v377, 4
        %v379 = vadd.f32 %v377, %v378
        %v380 = vrot.slane %v379, 2
        %v381 = vadd.f32 %v379, %v380
        %v382 = vrot.slane %v381, 1
        %v383 = vadd.f32 %v381, %v382
        %v384 = vadd.f32 %v334, 0.0
        %v385 = vadd.f32 %v341, 0.0
        %v386 = vadd.f32 %v348, 0.0
        %v387 = vadd.f32 %v355, 0.0
        %v388 = vadd.f32 %v362, 0.0
        %v389 = vadd.f32 %v369, 0.0
        %v390 = vadd.f32 %v376, 0.0
        %v391 = vadd.f32 %v383, 0.0
        %v392 = vmul.f32 %v384, 0.0625
        %v393 = vmul.f32 %v385, 0.0625
        %v394 = vmul.f32 %v386, 0.0625
        %v395 = vmul.f32 %v387, 0.0625
        %v396 = vmul.f32 %v388, 0.0625
        %v397 = vmul.f32 %v389, 0.0625
        %v398 = vmul.f32 %v390, 0.0625
        %v399 = vmul.f32 %v391, 0.0625
        %v400 = vld [vmem:[%s289] sm:$0xff]
        %v401 = vld [vmem:[%s289 + $0x8] sm:$0xff]
        %v402 = vld [vmem:[%s283] sm:$0xff]
        %v403 = vld [vmem:[%s283 + $0x8] sm:$0xff]
        %v404 = vld [vmem:[%s283 + $0x10] sm:$0xff]
        %v405 = vld [vmem:[%s283 + $0x18] sm:$0xff]
        %v406 = vld [vmem:[%s283 + $0x20] sm:$0xff]
        %v407 = vld [vmem:[%s283 + $0x28] sm:$0xff]
        %v408 = vld [vmem:[%s283 + $0x30] sm:$0xff]
        %v409 = vld [vmem:[%s283 + $0x38] sm:$0xff]
        %v410 = vld [vmem:[%s283 + $0x40] sm:$0xff]
        %v411 = vld [vmem:[%s283 + $0x48] sm:$0xff]
        %v412 = vld [vmem:[%s283 + $0x50] sm:$0xff]
        %v413 = vld [vmem:[%s283 + $0x58] sm:$0xff]
        %v414 = vld [vmem:[%s283 + $0x60] sm:$0xff]
        %v415 = vld [vmem:[%s283 + $0x68] sm:$0xff]
        %v416 = vld [vmem:[%s283 + $0x70] sm:$0xff]
        %v417 = vld [vmem:[%s283 + $0x78] sm:$0xff]
        %v418 = vld [vmem:[%s283 + $0x80] sm:$0xff]
        %v419 = vld [vmem:[%s283 + $0x88] sm:$0xff]
        %v420 = vld [vmem:[%s283 + $0x90] sm:$0xff]
        %v421 = vld [vmem:[%s283 + $0x98] sm:$0xff]
        %v422 = vld [vmem:[%s283 + $0xa0] sm:$0xff]
        %v423 = vld [vmem:[%s283 + $0xa8] sm:$0xff]
        %v424 = vld [vmem:[%s283 + $0xb0] sm:$0xff]
        %v425 = vld [vmem:[%s283 + $0xb8] sm:$0xff]
        %v426 = vld [vmem:[%s283 + $0xc0] sm:$0xff]
        %v427 = vld [vmem:[%s283 + $0xc8] sm:$0xff]
        %v428 = vld [vmem:[%s283 + $0xd0] sm:$0xff]
        %v429 = vld [vmem:[%s283 + $0xd8] sm:$0xff]
        %v430 = vld [vmem:[%s283 + $0xe0] sm:$0xff]
        %v431 = vld [vmem:[%s283 + $0xe8] sm:$0xff]
        %v432 = vld [vmem:[%s283 + $0xf0] sm:$0xff]
        %v433 = vld [vmem:[%s283 + $0xf8] sm:$0xff]
        %vm442 = vcmask 1041409
        %v443 = vsel %vm442, %v393, %v392
        %vm444 = vcmask 1042434
        %v445 = vsel %vm444, %v394, %v443
        %vm446 = vcmask 1043459
        %v447 = vsel %vm446, %v395, %v445
        %vm448 = vcmask 1044484
        %v449 = vsel %vm448, %v396, %v447
        %vm450 = vcmask 1045509
        %v451 = vsel %vm450, %v397, %v449
        %vm452 = vcmask 1046534
        %v453 = vsel %vm452, %v398, %v451
        %vm454 = vcmask 1047559
        %v455 = vsel %vm454, %v399, %v453
        %457 = vmatprep.subr.mxu0 %v433
        %458 = vmatpush1.msra.mxu0 %v432
        %459 = vmatprep.subr.mxu0 %v431
        %460 = vmatpush1.msra.mxu0 %v430
        %461 = vmatprep.subr.mxu0 %v429
        %462 = vmatpush1.msra.mxu0 %v428
        %463 = vmatprep.subr.mxu0 %v427
        %464 = vmatpush1.msra.mxu0 %v426
        %465 = vmatprep.subr.mxu0 %v425
        %466 = vmatpush1.msra.mxu0 %v424
        %467 = vmatprep.subr.mxu0 %v423
        %468 = vmatpush1.msra.mxu0 %v422
        %469 = vmatprep.subr.mxu0 %v421
        %470 = vmatpush1.msra.mxu0 %v420
        %471 = vmatprep.subr.mxu0 %v419
        %472 = vmatpush1.msra.mxu0 %v418
        %473 = vmatprep.subr.mxu0 %v417
        %474 = vmatpush1.msra.mxu0 %v416
        %475 = vmatprep.subr.mxu0 %v415
        %476 = vmatpush1.msra.mxu0 %v414
        %477 = vmatprep.subr.mxu0 %v413
        %478 = vmatpush1.msra.mxu0 %v412
        %479 = vmatprep.subr.mxu0 %v411
        %480 = vmatpush1.msra.mxu0 %v410
        %481 = vmatprep.subr.mxu0 %v409
        %482 = vmatpush1.msra.mxu0 %v408
        %483 = vmatprep.subr.mxu0 %v407
        %484 = vmatpush1.msra.mxu0 %v406
        %485 = vmatprep.subr.mxu0 %v405
        %486 = vmatpush1.msra.mxu0 %v404
        %487 = vmatprep.subr.mxu0 %v403
        %488 = vmatpush1.msra.mxu0 %v402
        %489 = vmatprep.subr.mxu0 0.0
        %490 = vmatpush2.msra.mxu0 0.0
        %491 = vmatprep.subr.mxu0 0.0
        %492 = vmatpush2.msra.mxu0 0.0
        %493 = vmatprep.subr.mxu0 0.0
        %494 = vmatpush2.msra.mxu0 0.0
        %495 = vmatprep.subr.mxu0 0.0
        %496 = vmatpush2.msra.mxu0 0.0
        %497 = vmatprep.subr.mxu0 0.0
        %498 = vmatpush2.msra.mxu0 0.0
        %499 = vmatprep.subr.mxu0 0.0
        %500 = vmatpush2.msra.mxu0 0.0
        %501 = vmatprep.subr.mxu0 0.0
        %502 = vmatpush2.msra.mxu0 0.0
        %503 = vmatprep.subr.mxu0 0.0
        %504 = vmatpush2.msra.mxu0 0.0
        %505 = vmatprep.subr.mxu0 0.0
        %506 = vmatpush2.msra.mxu0 0.0
        %507 = vmatprep.subr.mxu0 0.0
        %508 = vmatpush2.msra.mxu0 0.0
        %509 = vmatprep.subr.mxu0 0.0
        %510 = vmatpush2.msra.mxu0 0.0
        %511 = vmatprep.subr.mxu0 0.0
        %512 = vmatpush2.msra.mxu0 0.0
        %513 = vmatprep.subr.mxu0 0.0
        %514 = vmatpush2.msra.mxu0 0.0
        %515 = vmatprep.subr.mxu0 0.0
        %516 = vmatpush2.msra.mxu0 0.0
        %517 = vmatprep.subr.mxu0 0.0
        %518 = vmatpush2.msra.mxu0 0.0
        %519 = vmatprep.subr.mxu0 0.0
        %520 = vmatpush2.msra.mxu0 0.0
        %521 = vmatprep.mubr.f32.mxu0 0.0
        %522 = vmatmul.mubr.f32.gmra.mxu0 %v455
        %v523 = vpop.f32.mrf.mxu0
        %v524 = vadd.f32 0.0, %v523
        %v525 = vpop.f32.mrf.mxu0
        %v526 = vadd.f32 0.0, %v525
        %527 = vdwg.mxu0
        %v528 = vadd.f32 %v400, %v524
        %v529 = vadd.f32 %v401, %v526
        %530 = vst [vmem:[%s289] sm:$0xff] %v528
        %531 = vst [vmem:[%s289 + $0x8] sm:$0xff] %v529
        %p532 = scmp.lt.s32.totalorder %s17, 1
        %s533 = scalar_select %p532, %s17, 1
        %s534 = smul.addr %s533, 2
        %s535 = smul.addr %s534, 8
        %s536 = scalar_lea.vmem %s2, %s535
        // Predicated region
        $region74: #{sfunida_forward.2} parent=64 // pred_check
          %p537 = pneg %p97
        $region75: #{sfunida_forward.2} parent=64 // pred_check_branch
          %539 = sbr.rel (%p537) target = $region77
        $region76: #{sfunida_forward.2} parent=64 // pred_region
          _
        $region77: #{sfunida_forward.2} parent=64 // pred_fallthru
          _
      $region65: #{sfunida_forward.2} parent=5 // pred_fallthru
        _
      %p540 = scmp.le.s32.totalorder 2, %s8
      // Predicated region
      $region78: #{sfunida_forward.2} parent=5 // pred_check
        %p541 = pneg %p540
      $region79: #{sfunida_forward.2} parent=5 // pred_check_branch
        %543 = sbr.rel (%p541) target = $region81
      $region80: #{sfunida_forward.2} parent=5 // pred_region
        %s544 = ssub.s32 %s8, 2
        // Predicated region
        $region82: #{sfunida_forward.2} parent=80 // pred_check
          %p545 = pneg %p103
        $region83: #{sfunida_forward.2} parent=80 // pred_check_branch
          %547 = sbr.rel (%p545) target = $region85
        $region84: #{sfunida_forward.2} parent=80 // pred_region
          %p548 = scmp.lt.s32.totalorder %s19, 1
          %s549 = scalar_select %p548, %s19, 1
          %s550 = smul.addr %s549, 2
          %s551 = smul.addr %s550, 8
          %s552 = scalar_lea.vmem %s2, %s551
        $region85: #{sfunida_forward.2} parent=80 // pred_fallthru
          _
      $region81: #{sfunida_forward.2} parent=5 // pred_fallthru
        _
    $region6: #{sfunida_forward.2} parent=1 // loop_footer
      %s12 = sadd.s32 1, %s8
    $region7: #{sfunida_forward.2} parent=1 // loop_footer_branch
      %7 = sbr.rel target = $region3
    $region8: #{sfunida_forward.2} parent=1 // loop_exit
      _

</llo_original>
